<compile_context>
chip_gen: v6e
topology: v6e:2x2x1
jax: 0.10.0
libtpu: 0.0.40
codegen_flags: <defaults>
</compile_context>

<pallas_src>
import jax
import jax.numpy as jnp
from jax import lax
from jax.experimental import pallas as pl
from jax.experimental.pallas import tpu as pltpu

IN_F = 9      # module input features
HID_F = 9     # hidden features
OUT_F = 2     # output features
IN_P = 16     # padded (sublane-aligned) feature dims
HID_P = 16
OUT_P = 8
BN_EPS = 1e-5
LANE = 128


def _round_up(n, m):
    return ((n + m - 1) // m) * m


def _lineg_kernel(x_ref, w1_ref, b1_ref, w2_ref, b2_ref, o_ref):
    """x_ref: [IN_P, TB] (batch lane-dense) -> o_ref: [OUT_F, TB]."""
    x = x_ref[...]                                           # [16, TB]

    # Layer 1 on the MXU: h = ReLU(W1 @ X + b1).  Padded rows of W1/b1 are
    # zero, so h rows 9..15 are exactly 0 and contribute nothing downstream.
    h = jnp.dot(w1_ref[...], x,
                preferred_element_type=jnp.float32,
                precision=lax.Precision.HIGHEST)             # [16, TB]
    h = jnp.maximum(h + b1_ref[...], 0.0)

    # Eval BatchNorm + Dropout folded into W2/b2 on the host.  Layer 2 on the
    # MXU as well; only the first OUT_F rows are meaningful.
    z = jnp.dot(w2_ref[...], h,
                preferred_element_type=jnp.float32,
                precision=lax.Precision.HIGHEST)             # [8, TB]
    z = z[0:OUT_F, :] + b2_ref[...]                          # [2, TB]

    # Numerically stable sigmoid: exp of a non-positive argument only.
    # exp -> EUP slot; reciprocal via pl.reciprocal (exact) instead of a
    # VALU divide.
    e = jnp.exp(-jnp.abs(z))
    inv = pl.reciprocal(1.0 + e)                             # exact 1/(1+e)
    o_ref[...] = jnp.where(z >= 0.0, inv, 1.0 - inv)


def lineg_forward(x, params, *, tb=65536, x_feature_major=False):
    """Eval-mode forward of LinearG.

    x: [B, 9] float32 (or [9, B] if x_feature_major=True).  Returns [B, 2].
    """
    w1, b1, gamma, beta, running_mean, running_var, w2, b2 = params

    # Fold eval-mode BatchNorm into the second linear layer (exact algebra):
    #   z = (h*s + t) @ W2^T + b2 = h @ (W2*s)^T + (W2 @ t + b2)
    s = gamma / jnp.sqrt(running_var + BN_EPS)
    t = beta - running_mean * s
    w2_eff = (w2 * s[None, :]).astype(jnp.float32)                    # [2, 9]
    b2_eff = (b2 + jnp.sum(w2 * t[None, :], axis=1)).astype(jnp.float32)

    # Zero-pad weights/biases to sublane-aligned shapes (exact).
    w1_p = jnp.zeros((HID_P, IN_P), jnp.float32).at[:HID_F, :IN_F].set(
        w1.astype(jnp.float32))
    b1_p = jnp.zeros((HID_P, 1), jnp.float32).at[:HID_F, 0].set(
        b1.astype(jnp.float32))
    w2_p = jnp.zeros((OUT_P, HID_P), jnp.float32).at[:OUT_F, :HID_F].set(w2_eff)
    b2_p = b2_eff.reshape(OUT_F, 1)

    # Lane-dense layout: batch on the (last) lane axis.
    if x_feature_major:
        B = x.shape[1]
        x_fm = x.astype(jnp.float32)                                  # [9, B]
    else:
        B = x.shape[0]
        x_fm = x.astype(jnp.float32).T                                # [9, B]

    # Batch tiling: big tiles amortize the ~0.35us/step overhead; balanced
    # (ceil-split) tiles keep batch padding to at most one 128-lane group.
    tb = max(LANE, (min(tb, _round_up(B, LANE)) // LANE) * LANE)
    n_tiles = -(-B // tb)
    tb = _round_up(-(-B // n_tiles), LANE)
    b_pad = n_tiles * tb

    # Single fused transpose+pad copy (feature dim 9->16, batch -> b_pad).
    x_t = jnp.pad(x_fm, ((0, IN_P - IN_F), (0, b_pad - B)))           # [16, b_pad]

    resident = lambda shape: pl.BlockSpec(shape, lambda i: (0, 0))

    cost = pl.CostEstimate(
        flops=2 * (HID_P * IN_P + OUT_P * HID_P) * b_pad,
        transcendentals=OUT_F * b_pad,
        bytes_accessed=(IN_P + OUT_F) * 4 * b_pad
        + 4 * (HID_P * IN_P + HID_P + OUT_P * HID_P + OUT_F),
    )

    out_t = pl.pallas_call(
        _lineg_kernel,
        out_shape=jax.ShapeDtypeStruct((OUT_F, b_pad), jnp.float32),
        grid=(n_tiles,),
        in_specs=[
            pl.BlockSpec((IN_P, tb), lambda i: (0, i)),   # x tile (pipelined)
            resident((HID_P, IN_P)),                      # W1 (resident)
            resident((HID_P, 1)),                         # b1
            resident((OUT_P, HID_P)),                     # W2 (BN folded)
            resident((OUT_F, 1)),                         # b2 (BN folded)
        ],
        out_specs=pl.BlockSpec((OUT_F, tb), lambda i: (0, i)),
        compiler_params=pltpu.CompilerParams(
            dimension_semantics=("parallel",),
            vmem_limit_bytes=48 * 1024 * 1024),
        cost_estimate=cost,
    )(x_t, w1_p, b1_p, w2_p, b2_p)

    return out_t[:, :B].T                                  # back to [B, 2]


def init_params(key):
    """Deterministic synthetic parameters matching the PyTorch module shapes."""
    k1, k2, k3, k4, k5, k6, k7, k8 = jax.random.split(key, 8)
    # nn.Linear(9, 9): weight [9, 9], bias [9]
    w1 = jax.random.uniform(k1, (HID_F, IN_F), jnp.float32, -0.3, 0.3)
    b1 = jax.random.uniform(k2, (HID_F,), jnp.float32, -0.3, 0.3)
    # nn.BatchNorm1d(9): gamma, beta, running_mean, running_var (all [9])
    gamma = 1.0 + 0.1 * jax.random.normal(k3, (HID_F,), jnp.float32)
    beta = 0.1 * jax.random.normal(k4, (HID_F,), jnp.float32)
    running_mean = 0.1 * jax.random.normal(k5, (HID_F,), jnp.float32)
    running_var = 1.0 + 0.1 * jnp.abs(jax.random.normal(k6, (HID_F,), jnp.float32))
    # nn.Linear(9, 2): weight [2, 9], bias [2]
    w2 = jax.random.uniform(k7, (OUT_F, HID_F), jnp.float32, -0.3, 0.3)
    b2 = jax.random.uniform(k8, (OUT_F,), jnp.float32, -0.3, 0.3)
    return (w1, b1, gamma, beta, running_mean, running_var, w2, b2)


def _reference(x, params):
    """Faithful (unfolded) eval-mode forward at full precision."""
    w1, b1, gamma, beta, rm, rv, w2, b2 = params
    hp = lax.Precision.HIGHEST
    h = jnp.maximum(jnp.dot(x, w1.T, precision=hp) + b1, 0.0)
    h = (h - rm) / jnp.sqrt(rv + BN_EPS) * gamma + beta
    z = jnp.dot(h, w2.T, precision=hp) + b2
    return jax.nn.sigmoid(z)


if __name__ == "__main__":
    key = jax.random.PRNGKey(0)
    k_param, k_x1, k_x2 = jax.random.split(key, 3)
    params = init_params(k_param)

    # Small case: single tile, batch 8 padded to 128 lanes.
    x_small = jax.random.normal(k_x1, (8, IN_F), jnp.float32)
    out_small = jax.block_until_ready(lineg_forward(x_small, params))
    ref_small = _reference(x_small, params)
    assert out_small.shape == (8, OUT_F), out_small.shape
    assert jnp.allclose(out_small, ref_small, atol=1e-5, rtol=1e-5), \
        float(jnp.max(jnp.abs(out_small - ref_small)))

    # Feature-major input path (skips the wrapper transpose).
    out_fm = jax.block_until_ready(
        lineg_forward(x_small.T, params, x_feature_major=True))
    assert jnp.allclose(out_fm, ref_small, atol=1e-5, rtol=1e-5), \
        float(jnp.max(jnp.abs(out_fm - ref_small)))

    # Multi-tile case exercising the batch grid + padding (300 -> 3 tiles of 128).
    x_big = jax.random.normal(k_x2, (300, IN_F), jnp.float32)
    out_big = jax.block_until_ready(lineg_forward(x_big, params, tb=128))
    ref_big = _reference(x_big, params)
    assert out_big.shape == (300, OUT_F), out_big.shape
    assert jnp.allclose(out_big, ref_big, atol=1e-5, rtol=1e-5), \
        float(jnp.max(jnp.abs(out_big - ref_big)))

    print("KERNEL_OK")
</pallas_src>

<mosaic_0001>
module attributes {stable_mosaic.version = 11 : i64} {
  func.func @_lineg_kernel(%arg0: i32, %arg1: memref<16x128xf32, #tpu.memory_space<vmem>>, %arg2: memref<16x16xf32, #tpu.memory_space<vmem>>, %arg3: memref<16x1xf32, #tpu.memory_space<vmem>>, %arg4: memref<8x16xf32, #tpu.memory_space<vmem>>, %arg5: memref<2x1xf32, #tpu.memory_space<vmem>>, %arg6: memref<2x128xf32, #tpu.memory_space<vmem>>) attributes {dimension_semantics = [#tpu.dimension_semantics<parallel>], iteration_bounds = array<i64: 1>, scalar_prefetch = 0 : i64, scratch_operands = 0 : i64, tpu.core_type = #tpu.core_type<tc>, window_params = [{transform_indices = @transform_0, window_bounds = array<i64: 16, 128>}, {pipeline_mode = #tpu.pipeline_mode<synchronous>, transform_indices = @transform_1, window_bounds = array<i64: 16, 16>}, {pipeline_mode = #tpu.pipeline_mode<synchronous>, transform_indices = @transform_2, window_bounds = array<i64: 16, 1>}, {pipeline_mode = #tpu.pipeline_mode<synchronous>, transform_indices = @transform_3, window_bounds = array<i64: 8, 16>}, {pipeline_mode = #tpu.pipeline_mode<synchronous>, transform_indices = @transform_4, window_bounds = array<i64: 2, 1>}, {transform_indices = @transform_5, window_bounds = array<i64: 2, 128>}]} {
    %c0 = arith.constant 0 : index
    %c0_0 = arith.constant 0 : index
    %0 = vector.load %arg1[%c0, %c0_0] : memref<16x128xf32, #tpu.memory_space<vmem>>, vector<16x128xf32>
    %c0_1 = arith.constant 0 : index
    %c0_2 = arith.constant 0 : index
    %1 = vector.load %arg2[%c0_1, %c0_2] : memref<16x16xf32, #tpu.memory_space<vmem>>, vector<16x16xf32>
    %cst = arith.constant dense<0.000000e+00> : vector<16x128xf32>
    %2 = tpu.matmul %1, %0, %cst {dimension_numbers = #tpu.dot_dimension_numbers<[1], [0], [0], [1], [0, 0, 1, 1], [], []>, precision = #tpu.contract_precision<fp32>} : vector<16x16xf32>, vector<16x128xf32>, vector<16x128xf32> -> vector<16x128xf32>
    %c0_3 = arith.constant 0 : index
    %c0_4 = arith.constant 0 : index
    %3 = vector.load %arg3[%c0_3, %c0_4] : memref<16x1xf32, #tpu.memory_space<vmem>>, vector<16x1xf32>
    %4 = vector.broadcast %3 : vector<16x1xf32> to vector<16x128xf32>
    %5 = arith.addf %2, %4 : vector<16x128xf32>
    %cst_5 = arith.constant 0.000000e+00 : f32
    %6 = vector.broadcast %cst_5 : f32 to vector<16x128xf32>
    %7 = arith.maximumf %5, %6 : vector<16x128xf32>
    %c0_6 = arith.constant 0 : index
    %c0_7 = arith.constant 0 : index
    %8 = vector.load %arg4[%c0_6, %c0_7] : memref<8x16xf32, #tpu.memory_space<vmem>>, vector<8x16xf32>
    %cst_8 = arith.constant dense<0.000000e+00> : vector<8x128xf32>
    %9 = tpu.matmul %8, %7, %cst_8 {dimension_numbers = #tpu.dot_dimension_numbers<[1], [0], [0], [1], [0, 0, 1, 1], [], []>, precision = #tpu.contract_precision<fp32>} : vector<8x16xf32>, vector<16x128xf32>, vector<8x128xf32> -> vector<8x128xf32>
    %10 = vector.extract_strided_slice %9 {offsets = [0, 0], sizes = [2, 128], strides = [1, 1]} : vector<8x128xf32> to vector<2x128xf32>
    %c0_9 = arith.constant 0 : index
    %c0_10 = arith.constant 0 : index
    %11 = vector.load %arg5[%c0_9, %c0_10] : memref<2x1xf32, #tpu.memory_space<vmem>>, vector<2x1xf32>
    %12 = vector.broadcast %11 : vector<2x1xf32> to vector<2x128xf32>
    %13 = arith.addf %10, %12 : vector<2x128xf32>
    %14 = math.absf %13 : vector<2x128xf32>
    %cst_11 = arith.constant 0.000000e+00 : f32
    %15 = vector.broadcast %cst_11 : f32 to vector<2x128xf32>
    %16 = arith.subf %15, %14 : vector<2x128xf32>
    %17 = math.exp %16 : vector<2x128xf32>
    %cst_12 = arith.constant 1.000000e+00 : f32
    %18 = vector.broadcast %cst_12 : f32 to vector<2x128xf32>
    %19 = arith.addf %18, %17 : vector<2x128xf32>
    %20 = tpu.reciprocal %19 : vector<2x128xf32> -> vector<2x128xf32>
    %cst_13 = arith.constant 0.000000e+00 : f32
    %21 = vector.broadcast %cst_13 : f32 to vector<2x128xf32>
    %22 = arith.cmpf oge, %13, %21 : vector<2x128xf32>
    %cst_14 = arith.constant 1.000000e+00 : f32
    %23 = vector.broadcast %cst_14 : f32 to vector<2x128xf32>
    %24 = arith.subf %23, %20 : vector<2x128xf32>
    %25 = arith.select %22, %20, %24 : vector<2x128xi1>, vector<2x128xf32>
    %c0_15 = arith.constant 0 : index
    %c0_16 = arith.constant 0 : index
    %26 = vector.load %arg6[%c0_15, %c0_16] : memref<2x128xf32, #tpu.memory_space<vmem>>, vector<2x128xf32>
    tpu.vector_store %arg6[%c0_15, %c0_16], %25 {strides = array<i32>} : memref<2x128xf32, #tpu.memory_space<vmem>>, vector<2x128xf32>,
    return
  }
  func.func @transform_0(%arg0: i32) -> (i32, i32) {
    %c0_i32 = arith.constant 0 : i32
    %c0_i32_0 = arith.constant 0 : i32
    return %c0_i32, %arg0 : i32, i32
  }
  func.func @transform_1(%arg0: i32) -> (i32, i32) {
    %c0_i32 = arith.constant 0 : i32
    %c0_i32_0 = arith.constant 0 : i32
    %c0_i32_1 = arith.constant 0 : i32
    return %c0_i32, %c0_i32_0 : i32, i32
  }
  func.func @transform_2(%arg0: i32) -> (i32, i32) {
    %c0_i32 = arith.constant 0 : i32
    %c0_i32_0 = arith.constant 0 : i32
    %c0_i32_1 = arith.constant 0 : i32
    return %c0_i32, %c0_i32_0 : i32, i32
  }
  func.func @transform_3(%arg0: i32) -> (i32, i32) {
    %c0_i32 = arith.constant 0 : i32
    %c0_i32_0 = arith.constant 0 : i32
    %c0_i32_1 = arith.constant 0 : i32
    return %c0_i32, %c0_i32_0 : i32, i32
  }
  func.func @transform_4(%arg0: i32) -> (i32, i32) {
    %c0_i32 = arith.constant 0 : i32
    %c0_i32_0 = arith.constant 0 : i32
    %c0_i32_1 = arith.constant 0 : i32
    return %c0_i32, %c0_i32_0 : i32, i32
  }
  func.func @transform_5(%arg0: i32) -> (i32, i32) {
    %c0_i32 = arith.constant 0 : i32
    %c0_i32_0 = arith.constant 0 : i32
    return %c0_i32, %arg0 : i32, i32
  }
}

</mosaic_0001>

<llo_original>
// kernel: tpu_custom_call.1
$region0: #{tpu_custom_call.1}
  #allocation0 [shape = 'u32[]', space=smem, size = 0x4, offset = 0x4, fixed_abs, tag = 'smem constant byte address 0x4 - core index']
  #allocation1 [shape = 'u32[144,128]{1,0:T(1,128)}', space=vmem, size = 0x12000, scoped, tag = 'internal scratch']
  %s0 = inlined_call_operand.vmem [shape: f32[16,128], index: 0, kind: input, shape index: {}]
  %s1 = inlined_call_operand.hbm [shape: f32[16,16], index: 1, kind: input, shape index: {}]
  %s2 = inlined_call_operand.vmem [shape: f32[16,1], index: 2, kind: input, shape index: {}]
  %s3 = inlined_call_operand.vmem [shape: f32[8,16], index: 3, kind: input, shape index: {}]
  %s4 = inlined_call_operand.vmem [shape: f32[2,1], index: 4, kind: input, shape index: {}]
  %s5 = inlined_call_operand.hbm [shape: f32[2,128], index: 5, kind: output, shape index: {}]
  %s6 = sld [smem:[#allocation0]]
  $region34: #{tpu_custom_call.1} parent=0
    _
  %s8 = ssub.s32 1, %s6
  %s9 = scalar_select 0, %s8, %s6
  $region1: #{tpu_custom_call.1} parent=0
    #allocation2 [shape = 'u8[8192]{0}', space=vmem, size = 0x2000, scoped, tag = 'input window, operand 1, single buffered']
    #allocation3 [shape = 's32[1]{0}', space=sflag, size = 0x4, scoped, tag = 'scoped memory for tpu_custom_call.1']
    #allocation4 [shape = 's32[1]{0}', space=sflag, size = 0x4, scoped, tag = 'scoped memory for tpu_custom_call.1']
    #allocation5 [shape = 'u8[1024]{0}', space=vmem, size = 0x400, scoped, tag = 'output window, operand 0, single buffered']
    %10 = vsyncpa [#allocation3], 0
    %11 = vsyncpa [#allocation4], 0
    // Predicated region
    $region2: #{tpu_custom_call.1} parent=1 // pred_check
      _
    $region3: #{tpu_custom_call.1} parent=1 // pred_check_branch
      %13 = sbr.rel (0) target = $region5
    $region4: #{tpu_custom_call.1} parent=1 // pred_region
      _
    $region5: #{tpu_custom_call.1} parent=1 // pred_fallthru
      _
    // Predicated region
    $region6: #{tpu_custom_call.1} parent=1 // pred_check
      _
    $region7: #{tpu_custom_call.1} parent=1 // pred_check_branch
      %15 = sbr.rel (0) target = $region9
    $region8: #{tpu_custom_call.1} parent=1 // pred_region
      %s17 = ssub.s32 256, 256
      %18 = vsyncadd [#allocation3], %s17
      %s19 = sshll.u32 [#allocation2], 4
      %s20 = int_to_ptr.vmem [resolvable:$true] %s19
      %25 = dma.hbm_to_vmem [thread:$0]  %s1, 256, %s20, [#allocation3], 128, 128, 8
    $region9: #{tpu_custom_call.1} parent=1 // pred_fallthru
      _
    // Predicated region
    $region10: #{tpu_custom_call.1} parent=1 // pred_check
      _
    $region11: #{tpu_custom_call.1} parent=1 // pred_check_branch
      %27 = sbr.rel (0) target = $region13
    $region12: #{tpu_custom_call.1} parent=1 // pred_region
      _
    $region13: #{tpu_custom_call.1} parent=1 // pred_fallthru
      _
    // Predicated region
    $region14: #{tpu_custom_call.1} parent=1 // pred_check
      _
    $region15: #{tpu_custom_call.1} parent=1 // pred_check_branch
      %29 = sbr.rel (0) target = $region17
    $region16: #{tpu_custom_call.1} parent=1 // pred_region
      _
    $region17: #{tpu_custom_call.1} parent=1 // pred_fallthru
      _
    // Predicated region
    $region18: #{tpu_custom_call.1} parent=1 // pred_check
      _
    $region19: #{tpu_custom_call.1} parent=1 // pred_check_branch
      %31 = sbr.rel (0) target = $region21
    $region20: #{tpu_custom_call.1} parent=1 // pred_region
      _
    $region21: #{tpu_custom_call.1} parent=1 // pred_fallthru
      _
    // Predicated region
    $region22: #{tpu_custom_call.1} parent=1 // pred_check
      _
    $region23: #{tpu_custom_call.1} parent=1 // pred_check_branch
      %33 = sbr.rel (0) target = $region25
    $region24: #{tpu_custom_call.1} parent=1 // pred_region
      %34 = dma.done [#allocation3], 256
    $region25: #{tpu_custom_call.1} parent=1 // pred_fallthru
      _
    %v35 = vld [vmem:[%s0] sm:$0xff]
    %v36 = vld [vmem:[%s0 + $0x8] sm:$0xff]
    %v37 = vld [vmem:[#allocation2] sm:$0xff]
    %v38 = vld [vmem:[#allocation2 + $0x8] sm:$0xff]
    %v39 = vld [vmem:[%s2] sm:$0xff]
    %v40 = vld [vmem:[%s2 + $0x8] sm:$0xff]
    %42 = vset.pattern.permute.xlu0 0
    %43 = vperm.xlu0 %42, %v39
    %v44 = vpop.permute.xlu0 %43
    %47 = vset.pattern.permute.xlu0 0
    %48 = vperm.xlu0 %47, %v40
    %v49 = vpop.permute.xlu0 %48
    %vm51 = vcmask 130048
    %v53 = vsel %vm51, %v37, 0
    %v56 = vsel %vm51, %v38, 0
    %58 = vmatprep.subr.mxu0 0.0
    %59 = vmatpush1.msra.mxu0 0.0
    %60 = vmatprep.subr.mxu0 0.0
    %61 = vmatpush1.msra.mxu0 0.0
    %62 = vmatprep.subr.mxu0 0.0
    %63 = vmatpush1.msra.mxu0 0.0
    %64 = vmatprep.subr.mxu0 0.0
    %65 = vmatpush1.msra.mxu0 0.0
    %66 = vmatprep.subr.mxu0 0.0
    %67 = vmatpush1.msra.mxu0 0.0
    %68 = vmatprep.subr.mxu0 0.0
    %69 = vmatpush1.msra.mxu0 0.0
    %70 = vmatprep.subr.mxu0 0.0
    %71 = vmatpush1.msra.mxu0 0.0
    %72 = vmatprep.subr.mxu0 0.0
    %73 = vmatpush1.msra.mxu0 0.0
    %74 = vmatprep.subr.mxu0 0.0
    %75 = vmatpush1.msra.mxu0 0.0
    %76 = vmatprep.subr.mxu0 0.0
    %77 = vmatpush1.msra.mxu0 0.0
    %78 = vmatprep.subr.mxu0 0.0
    %79 = vmatpush1.msra.mxu0 0.0
    %80 = vmatprep.subr.mxu0 0.0
    %81 = vmatpush1.msra.mxu0 0.0
    %82 = vmatprep.subr.mxu0 0.0
    %83 = vmatpush1.msra.mxu0 0.0
    %84 = vmatprep.subr.mxu0 0.0
    %85 = vmatpush1.msra.mxu0 0.0
    %86 = vmatprep.subr.mxu0 0.0
    %v87 = vand.u32 %v36, 4294901760
    %88 = vmatpush1.msra.mxu0 %v87
    %89 = vmatprep.subr.mxu0 0.0
    %v90 = vand.u32 %v35, 4294901760
    %91 = vmatpush1.msra.mxu0 %v90
    %92 = vmatprep.subr.mxu0 0.0
    %93 = vmatpush2.msra.mxu0 0.0
    %94 = vmatprep.subr.mxu0 0.0
    %95 = vmatpush2.msra.mxu0 0.0
    %96 = vmatprep.subr.mxu0 0.0
    %97 = vmatpush2.msra.mxu0 0.0
    %98 = vmatprep.subr.mxu0 0.0
    %99 = vmatpush2.msra.mxu0 0.0
    %100 = vmatprep.subr.mxu0 0.0
    %101 = vmatpush2.msra.mxu0 0.0
    %102 = vmatprep.subr.mxu0 0.0
    %103 = vmatpush2.msra.mxu0 0.0
    %104 = vmatprep.subr.mxu0 0.0
    %105 = vmatpush2.msra.mxu0 0.0
    %106 = vmatprep.subr.mxu0 0.0
    %107 = vmatpush2.msra.mxu0 0.0
    %108 = vmatprep.subr.mxu0 0.0
    %109 = vmatpush2.msra.mxu0 0.0
    %110 = vmatprep.subr.mxu0 0.0
    %111 = vmatpush2.msra.mxu0 0.0
    %112 = vmatprep.subr.mxu0 0.0
    %113 = vmatpush2.msra.mxu0 0.0
    %114 = vmatprep.subr.mxu0 0.0
    %115 = vmatpush2.msra.mxu0 0.0
    %116 = vmatprep.subr.mxu0 0.0
    %117 = vmatpush2.msra.mxu0 0.0
    %118 = vmatprep.subr.mxu0 0.0
    %119 = vmatpush2.msra.mxu0 0.0
    %120 = vmatprep.subr.mxu0 0.0
    %121 = vmatpush2.msra.mxu0 0.0
    %122 = vmatprep.subr.mxu0 0.0
    %123 = vmatpush2.msra.mxu0 0.0
    %124 = vmatprep.mubr.f32.mxu0 0.0
    %v125 = vand.u32 %v53, 4294901760
    %v126 = vsub.f32 %v53, %v125
    %v127 = vand.u32 %v126, 4294901760
    %v128 = vsub.f32 %v126, %v127
    %v129 = vand.u32 %v128, 4294901760
    %130 = vmatmul.mubr.f32.gmra.mxu0 %v129
    %v131 = vpop.f32.mrf.mxu0
    %v132 = vadd.f32 %v44, %v131
    %v133 = vpop.f32.mrf.mxu0
    %134 = vmatprep.mubr.f32.mxu0 0.0
    %v135 = vand.u32 %v56, 4294901760
    %v136 = vsub.f32 %v56, %v135
    %v137 = vand.u32 %v136, 4294901760
    %v138 = vsub.f32 %v136, %v137
    %v139 = vand.u32 %v138, 4294901760
    %140 = vmatmul.mubr.f32.gmra.mxu0 %v139
    %v141 = vpop.f32.mrf.mxu0
    %v142 = vadd.f32 %v49, %v141
    %v143 = vpop.f32.mrf.mxu0
    %144 = vdwg.mxu0
    %145 = vmatprep.subr.mxu0 0.0
    %146 = vmatpush1.msra.mxu0 0.0
    %147 = vmatprep.subr.mxu0 0.0
    %148 = vmatpush1.msra.mxu0 0.0
    %149 = vmatprep.subr.mxu0 0.0
    %150 = vmatpush1.msra.mxu0 0.0
    %151 = vmatprep.subr.mxu0 0.0
    %152 = vmatpush1.msra.mxu0 0.0
    %153 = vmatprep.subr.mxu0 0.0
    %154 = vmatpush1.msra.mxu0 0.0
    %155 = vmatprep.subr.mxu0 0.0
    %156 = vmatpush1.msra.mxu0 0.0
    %157 = vmatprep.subr.mxu0 0.0
    %158 = vmatpush1.msra.mxu0 0.0
    %159 = vmatprep.subr.mxu0 0.0
    %160 = vmatpush1.msra.mxu0 0.0
    %161 = vmatprep.subr.mxu0 0.0
    %162 = vmatpush1.msra.mxu0 0.0
    %163 = vmatprep.subr.mxu0 0.0
    %164 = vmatpush1.msra.mxu0 0.0
    %165 = vmatprep.subr.mxu0 0.0
    %166 = vmatpush1.msra.mxu0 0.0
    %167 = vmatprep.subr.mxu0 0.0
    %168 = vmatpush1.msra.mxu0 0.0
    %169 = vmatprep.subr.mxu0 0.0
    %170 = vmatpush1.msra.mxu0 0.0
    %171 = vmatprep.subr.mxu0 0.0
    %172 = vmatpush1.msra.mxu0 0.0
    %173 = vmatprep.subr.mxu0 0.0
    %v174 = vand.u32 %v36, 4294901760
    %v175 = vsub.f32 %v36, %v174
    %v176 = vand.u32 %v175, 4294901760
    %v177 = vsub.f32 %v175, %v176
    %v178 = vand.u32 %v177, 4294901760
    %179 = vmatpush1.msra.mxu0 %v178
    %180 = vmatprep.subr.mxu0 0.0
    %v181 = vand.u32 %v35, 4294901760
    %v182 = vsub.f32 %v35, %v181
    %v183 = vand.u32 %v182, 4294901760
    %v184 = vsub.f32 %v182, %v183
    %v185 = vand.u32 %v184, 4294901760
    %186 = vmatpush1.msra.mxu0 %v185
    %187 = vmatprep.subr.mxu0 0.0
    %188 = vmatpush2.msra.mxu0 0.0
    %189 = vmatprep.subr.mxu0 0.0
    %190 = vmatpush2.msra.mxu0 0.0
    %191 = vmatprep.subr.mxu0 0.0
    %192 = vmatpush2.msra.mxu0 0.0
    %193 = vmatprep.subr.mxu0 0.0
    %194 = vmatpush2.msra.mxu0 0.0
    %195 = vmatprep.subr.mxu0 0.0
    %196 = vmatpush2.msra.mxu0 0.0
    %197 = vmatprep.subr.mxu0 0.0
    %198 = vmatpush2.msra.mxu0 0.0
    %199 = vmatprep.subr.mxu0 0.0
    %200 = vmatpush2.msra.mxu0 0.0
    %201 = vmatprep.subr.mxu0 0.0
    %202 = vmatpush2.msra.mxu0 0.0
    %203 = vmatprep.subr.mxu0 0.0
    %204 = vmatpush2.msra.mxu0 0.0
    %205 = vmatprep.subr.mxu0 0.0
    %206 = vmatpush2.msra.mxu0 0.0
    %207 = vmatprep.subr.mxu0 0.0
    %208 = vmatpush2.msra.mxu0 0.0
    %209 = vmatprep.subr.mxu0 0.0
    %210 = vmatpush2.msra.mxu0 0.0
    %211 = vmatprep.subr.mxu0 0.0
    %212 = vmatpush2.msra.mxu0 0.0
    %213 = vmatprep.subr.mxu0 0.0
    %214 = vmatpush2.msra.mxu0 0.0
    %215 = vmatprep.subr.mxu0 0.0
    %216 = vmatpush2.msra.mxu0 0.0
    %217 = vmatprep.subr.mxu0 0.0
    %218 = vmatpush2.msra.mxu0 0.0
    %219 = vmatprep.mubr.f32.mxu0 0.0
    %v220 = vand.u32 %v53, 4294901760
    %221 = vmatmul.mubr.f32.gmra.mxu0 %v220
    %v222 = vpop.f32.mrf.mxu0
    %v223 = vadd.f32 %v132, %v222
    %v224 = vpop.f32.mrf.mxu0
    %225 = vmatprep.mubr.f32.mxu0 0.0
    %v226 = vand.u32 %v56, 4294901760
    %227 = vmatmul.mubr.f32.gmra.mxu0 %v226
    %v228 = vpop.f32.mrf.mxu0
    %v229 = vadd.f32 %v142, %v228
    %v230 = vpop.f32.mrf.mxu0
    %231 = vdwg.mxu0
    %232 = vmatprep.subr.mxu0 0.0
    %233 = vmatpush1.msra.mxu0 0.0
    %234 = vmatprep.subr.mxu0 0.0
    %235 = vmatpush1.msra.mxu0 0.0
    %236 = vmatprep.subr.mxu0 0.0
    %237 = vmatpush1.msra.mxu0 0.0
    %238 = vmatprep.subr.mxu0 0.0
    %239 = vmatpush1.msra.mxu0 0.0
    %240 = vmatprep.subr.mxu0 0.0
    %241 = vmatpush1.msra.mxu0 0.0
    %242 = vmatprep.subr.mxu0 0.0
    %243 = vmatpush1.msra.mxu0 0.0
    %244 = vmatprep.subr.mxu0 0.0
    %245 = vmatpush1.msra.mxu0 0.0
    %246 = vmatprep.subr.mxu0 0.0
    %247 = vmatpush1.msra.mxu0 0.0
    %248 = vmatprep.subr.mxu0 0.0
    %249 = vmatpush1.msra.mxu0 0.0
    %250 = vmatprep.subr.mxu0 0.0
    %251 = vmatpush1.msra.mxu0 0.0
    %252 = vmatprep.subr.mxu0 0.0
    %253 = vmatpush1.msra.mxu0 0.0
    %254 = vmatprep.subr.mxu0 0.0
    %255 = vmatpush1.msra.mxu0 0.0
    %256 = vmatprep.subr.mxu0 0.0
    %257 = vmatpush1.msra.mxu0 0.0
    %258 = vmatprep.subr.mxu0 0.0
    %259 = vmatpush1.msra.mxu0 0.0
    %260 = vmatprep.subr.mxu0 0.0
    %v261 = vand.u32 %v36, 4294901760
    %v262 = vsub.f32 %v36, %v261
    %263 = vmatpush1.msra.mxu0 %v262
    %264 = vmatprep.subr.mxu0 0.0
    %v265 = vand.u32 %v35, 4294901760
    %v266 = vsub.f32 %v35, %v265
    %267 = vmatpush1.msra.mxu0 %v266
    %268 = vmatprep.subr.mxu0 0.0
    %269 = vmatpush2.msra.mxu0 0.0
    %270 = vmatprep.subr.mxu0 0.0
    %271 = vmatpush2.msra.mxu0 0.0
    %272 = vmatprep.subr.mxu0 0.0
    %273 = vmatpush2.msra.mxu0 0.0
    %274 = vmatprep.subr.mxu0 0.0
    %275 = vmatpush2.msra.mxu0 0.0
    %276 = vmatprep.subr.mxu0 0.0
    %277 = vmatpush2.msra.mxu0 0.0
    %278 = vmatprep.subr.mxu0 0.0
    %279 = vmatpush2.msra.mxu0 0.0
    %280 = vmatprep.subr.mxu0 0.0
    %281 = vmatpush2.msra.mxu0 0.0
    %282 = vmatprep.subr.mxu0 0.0
    %283 = vmatpush2.msra.mxu0 0.0
    %284 = vmatprep.subr.mxu0 0.0
    %285 = vmatpush2.msra.mxu0 0.0
    %286 = vmatprep.subr.mxu0 0.0
    %287 = vmatpush2.msra.mxu0 0.0
    %288 = vmatprep.subr.mxu0 0.0
    %289 = vmatpush2.msra.mxu0 0.0
    %290 = vmatprep.subr.mxu0 0.0
    %291 = vmatpush2.msra.mxu0 0.0
    %292 = vmatprep.subr.mxu0 0.0
    %293 = vmatpush2.msra.mxu0 0.0
    %294 = vmatprep.subr.mxu0 0.0
    %295 = vmatpush2.msra.mxu0 0.0
    %296 = vmatprep.subr.mxu0 0.0
    %297 = vmatpush2.msra.mxu0 0.0
    %298 = vmatprep.subr.mxu0 0.0
    %299 = vmatpush2.msra.mxu0 0.0
    %300 = vmatprep.mubr.f32.mxu0 0.0
    %v301 = vand.u32 %v53, 4294901760
    %v302 = vsub.f32 %v53, %v301
    %303 = vmatmul.mubr.f32.gmra.mxu0 %v302
    %v304 = vpop.f32.mrf.mxu0
    %v305 = vadd.f32 %v223, %v304
    %v306 = vpop.f32.mrf.mxu0
    %307 = vmatprep.mubr.f32.mxu0 0.0
    %v308 = vand.u32 %v56, 4294901760
    %v309 = vsub.f32 %v56, %v308
    %310 = vmatmul.mubr.f32.gmra.mxu0 %v309
    %v311 = vpop.f32.mrf.mxu0
    %v312 = vadd.f32 %v229, %v311
    %v313 = vpop.f32.mrf.mxu0
    %314 = vdwg.mxu0
    %315 = vmatprep.subr.mxu0 0.0
    %316 = vmatpush1.msra.mxu0 0.0
    %317 = vmatprep.subr.mxu0 0.0
    %318 = vmatpush1.msra.mxu0 0.0
    %319 = vmatprep.subr.mxu0 0.0
    %320 = vmatpush1.msra.mxu0 0.0
    %321 = vmatprep.subr.mxu0 0.0
    %322 = vmatpush1.msra.mxu0 0.0
    %323 = vmatprep.subr.mxu0 0.0
    %324 = vmatpush1.msra.mxu0 0.0
    %325 = vmatprep.subr.mxu0 0.0
    %326 = vmatpush1.msra.mxu0 0.0
    %327 = vmatprep.subr.mxu0 0.0
    %328 = vmatpush1.msra.mxu0 0.0
    %329 = vmatprep.subr.mxu0 0.0
    %330 = vmatpush1.msra.mxu0 0.0
    %331 = vmatprep.subr.mxu0 0.0
    %332 = vmatpush1.msra.mxu0 0.0
    %333 = vmatprep.subr.mxu0 0.0
    %334 = vmatpush1.msra.mxu0 0.0
    %335 = vmatprep.subr.mxu0 0.0
    %336 = vmatpush1.msra.mxu0 0.0
    %337 = vmatprep.subr.mxu0 0.0
    %338 = vmatpush1.msra.mxu0 0.0
    %339 = vmatprep.subr.mxu0 0.0
    %340 = vmatpush1.msra.mxu0 0.0
    %341 = vmatprep.subr.mxu0 0.0
    %342 = vmatpush1.msra.mxu0 0.0
    %343 = vmatprep.subr.mxu0 0.0
    %v344 = vand.u32 %v36, 4294901760
    %345 = vmatpush1.msra.mxu0 %v344
    %346 = vmatprep.subr.mxu0 0.0
    %v347 = vand.u32 %v35, 4294901760
    %348 = vmatpush1.msra.mxu0 %v347
    %349 = vmatprep.subr.mxu0 0.0
    %350 = vmatpush2.msra.mxu0 0.0
    %351 = vmatprep.subr.mxu0 0.0
    %352 = vmatpush2.msra.mxu0 0.0
    %353 = vmatprep.subr.mxu0 0.0
    %354 = vmatpush2.msra.mxu0 0.0
    %355 = vmatprep.subr.mxu0 0.0
    %356 = vmatpush2.msra.mxu0 0.0
    %357 = vmatprep.subr.mxu0 0.0
    %358 = vmatpush2.msra.mxu0 0.0
    %359 = vmatprep.subr.mxu0 0.0
    %360 = vmatpush2.msra.mxu0 0.0
    %361 = vmatprep.subr.mxu0 0.0
    %362 = vmatpush2.msra.mxu0 0.0
    %363 = vmatprep.subr.mxu0 0.0
    %364 = vmatpush2.msra.mxu0 0.0
    %365 = vmatprep.subr.mxu0 0.0
    %366 = vmatpush2.msra.mxu0 0.0
    %367 = vmatprep.subr.mxu0 0.0
    %368 = vmatpush2.msra.mxu0 0.0
    %369 = vmatprep.subr.mxu0 0.0
    %370 = vmatpush2.msra.mxu0 0.0
    %371 = vmatprep.subr.mxu0 0.0
    %372 = vmatpush2.msra.mxu0 0.0
    %373 = vmatprep.subr.mxu0 0.0
    %374 = vmatpush2.msra.mxu0 0.0
    %375 = vmatprep.subr.mxu0 0.0
    %376 = vmatpush2.msra.mxu0 0.0
    %377 = vmatprep.subr.mxu0 0.0
    %378 = vmatpush2.msra.mxu0 0.0
    %379 = vmatprep.subr.mxu0 0.0
    %380 = vmatpush2.msra.mxu0 0.0
    %381 = vmatprep.mubr.f32.mxu0 0.0
    %v382 = vand.u32 %v53, 4294901760
    %v383 = vsub.f32 %v53, %v382
    %v384 = vand.u32 %v383, 4294901760
    %385 = vmatmul.mubr.f32.gmra.mxu0 %v384
    %v386 = vpop.f32.mrf.mxu0
    %v387 = vadd.f32 %v305, %v386
    %v388 = vpop.f32.mrf.mxu0
    %389 = vmatprep.mubr.f32.mxu0 0.0
    %v390 = vand.u32 %v56, 4294901760
    %v391 = vsub.f32 %v56, %v390
    %v392 = vand.u32 %v391, 4294901760
    %393 = vmatmul.mubr.f32.gmra.mxu0 %v392
    %v394 = vpop.f32.mrf.mxu0
    %v395 = vadd.f32 %v312, %v394
    %v396 = vpop.f32.mrf.mxu0
    %397 = vdwg.mxu0
    %398 = vmatprep.subr.mxu0 0.0
    %399 = vmatpush1.msra.mxu0 0.0
    %400 = vmatprep.subr.mxu0 0.0
    %401 = vmatpush1.msra.mxu0 0.0
    %402 = vmatprep.subr.mxu0 0.0
    %403 = vmatpush1.msra.mxu0 0.0
    %404 = vmatprep.subr.mxu0 0.0
    %405 = vmatpush1.msra.mxu0 0.0
    %406 = vmatprep.subr.mxu0 0.0
    %407 = vmatpush1.msra.mxu0 0.0
    %408 = vmatprep.subr.mxu0 0.0
    %409 = vmatpush1.msra.mxu0 0.0
    %410 = vmatprep.subr.mxu0 0.0
    %411 = vmatpush1.msra.mxu0 0.0
    %412 = vmatprep.subr.mxu0 0.0
    %413 = vmatpush1.msra.mxu0 0.0
    %414 = vmatprep.subr.mxu0 0.0
    %415 = vmatpush1.msra.mxu0 0.0
    %416 = vmatprep.subr.mxu0 0.0
    %417 = vmatpush1.msra.mxu0 0.0
    %418 = vmatprep.subr.mxu0 0.0
    %419 = vmatpush1.msra.mxu0 0.0
    %420 = vmatprep.subr.mxu0 0.0
    %421 = vmatpush1.msra.mxu0 0.0
    %422 = vmatprep.subr.mxu0 0.0
    %423 = vmatpush1.msra.mxu0 0.0
    %424 = vmatprep.subr.mxu0 0.0
    %425 = vmatpush1.msra.mxu0 0.0
    %426 = vmatprep.subr.mxu0 0.0
    %v427 = vand.u32 %v36, 4294901760
    %v428 = vsub.f32 %v36, %v427
    %v429 = vand.u32 %v428, 4294901760
    %430 = vmatpush1.msra.mxu0 %v429
    %431 = vmatprep.subr.mxu0 0.0
    %v432 = vand.u32 %v35, 4294901760
    %v433 = vsub.f32 %v35, %v432
    %v434 = vand.u32 %v433, 4294901760
    %435 = vmatpush1.msra.mxu0 %v434
    %436 = vmatprep.subr.mxu0 0.0
    %437 = vmatpush2.msra.mxu0 0.0
    %438 = vmatprep.subr.mxu0 0.0
    %439 = vmatpush2.msra.mxu0 0.0
    %440 = vmatprep.subr.mxu0 0.0
    %441 = vmatpush2.msra.mxu0 0.0
    %442 = vmatprep.subr.mxu0 0.0
    %443 = vmatpush2.msra.mxu0 0.0
    %444 = vmatprep.subr.mxu0 0.0
    %445 = vmatpush2.msra.mxu0 0.0
    %446 = vmatprep.subr.mxu0 0.0
    %447 = vmatpush2.msra.mxu0 0.0
    %448 = vmatprep.subr.mxu0 0.0
    %449 = vmatpush2.msra.mxu0 0.0
    %450 = vmatprep.subr.mxu0 0.0
    %451 = vmatpush2.msra.mxu0 0.0
    %452 = vmatprep.subr.mxu0 0.0
    %453 = vmatpush2.msra.mxu0 0.0
    %454 = vmatprep.subr.mxu0 0.0
    %455 = vmatpush2.msra.mxu0 0.0
    %456 = vmatprep.subr.mxu0 0.0
    %457 = vmatpush2.msra.mxu0 0.0
    %458 = vmatprep.subr.mxu0 0.0
    %459 = vmatpush2.msra.mxu0 0.0
    %460 = vmatprep.subr.mxu0 0.0
    %461 = vmatpush2.msra.mxu0 0.0
    %462 = vmatprep.subr.mxu0 0.0
    %463 = vmatpush2.msra.mxu0 0.0
    %464 = vmatprep.subr.mxu0 0.0
    %465 = vmatpush2.msra.mxu0 0.0
    %466 = vmatprep.subr.mxu0 0.0
    %467 = vmatpush2.msra.mxu0 0.0
    %468 = vmatprep.mubr.f32.mxu0 0.0
    %v469 = vand.u32 %v53, 4294901760
    %470 = vmatmul.mubr.f32.gmra.mxu0 %v469
    %v471 = vpop.f32.mrf.mxu0
    %v472 = vadd.f32 %v387, %v471
    %v473 = vpop.f32.mrf.mxu0
    %474 = vmatprep.mubr.f32.mxu0 0.0
    %v475 = vand.u32 %v56, 4294901760
    %476 = vmatmul.mubr.f32.gmra.mxu0 %v475
    %v477 = vpop.f32.mrf.mxu0
    %v478 = vadd.f32 %v395, %v477
    %v479 = vpop.f32.mrf.mxu0
    %480 = vdwg.mxu0
    %481 = vmatprep.subr.mxu0 0.0
    %482 = vmatpush1.msra.mxu0 0.0
    %483 = vmatprep.subr.mxu0 0.0
    %484 = vmatpush1.msra.mxu0 0.0
    %485 = vmatprep.subr.mxu0 0.0
    %486 = vmatpush1.msra.mxu0 0.0
    %487 = vmatprep.subr.mxu0 0.0
    %488 = vmatpush1.msra.mxu0 0.0
    %489 = vmatprep.subr.mxu0 0.0
    %490 = vmatpush1.msra.mxu0 0.0
    %491 = vmatprep.subr.mxu0 0.0
    %492 = vmatpush1.msra.mxu0 0.0
    %493 = vmatprep.subr.mxu0 0.0
    %494 = vmatpush1.msra.mxu0 0.0
    %495 = vmatprep.subr.mxu0 0.0
    %496 = vmatpush1.msra.mxu0 0.0
    %497 = vmatprep.subr.mxu0 0.0
    %498 = vmatpush1.msra.mxu0 0.0
    %499 = vmatprep.subr.mxu0 0.0
    %500 = vmatpush1.msra.mxu0 0.0
    %501 = vmatprep.subr.mxu0 0.0
    %502 = vmatpush1.msra.mxu0 0.0
    %503 = vmatprep.subr.mxu0 0.0
    %504 = vmatpush1.msra.mxu0 0.0
    %505 = vmatprep.subr.mxu0 0.0
    %506 = vmatpush1.msra.mxu0 0.0
    %507 = vmatprep.subr.mxu0 0.0
    %508 = vmatpush1.msra.mxu0 0.0
    %509 = vmatprep.subr.mxu0 0.0
    %v510 = vand.u32 %v36, 4294901760
    %511 = vmatpush1.msra.mxu0 %v510
    %512 = vmatprep.subr.mxu0 0.0
    %v513 = vand.u32 %v35, 4294901760
    %514 = vmatpush1.msra.mxu0 %v513
    %515 = vmatprep.subr.mxu0 0.0
    %516 = vmatpush2.msra.mxu0 0.0
    %517 = vmatprep.subr.mxu0 0.0
    %518 = vmatpush2.msra.mxu0 0.0
    %519 = vmatprep.subr.mxu0 0.0
    %520 = vmatpush2.msra.mxu0 0.0
    %521 = vmatprep.subr.mxu0 0.0
    %522 = vmatpush2.msra.mxu0 0.0
    %523 = vmatprep.subr.mxu0 0.0
    %524 = vmatpush2.msra.mxu0 0.0
    %525 = vmatprep.subr.mxu0 0.0
    %526 = vmatpush2.msra.mxu0 0.0
    %527 = vmatprep.subr.mxu0 0.0
    %528 = vmatpush2.msra.mxu0 0.0
    %529 = vmatprep.subr.mxu0 0.0
    %530 = vmatpush2.msra.mxu0 0.0
    %531 = vmatprep.subr.mxu0 0.0
    %532 = vmatpush2.msra.mxu0 0.0
    %533 = vmatprep.subr.mxu0 0.0
    %534 = vmatpush2.msra.mxu0 0.0
    %535 = vmatprep.subr.mxu0 0.0
    %536 = vmatpush2.msra.mxu0 0.0
    %537 = vmatprep.subr.mxu0 0.0
    %538 = vmatpush2.msra.mxu0 0.0
    %539 = vmatprep.subr.mxu0 0.0
    %540 = vmatpush2.msra.mxu0 0.0
    %541 = vmatprep.subr.mxu0 0.0
    %542 = vmatpush2.msra.mxu0 0.0
    %543 = vmatprep.subr.mxu0 0.0
    %544 = vmatpush2.msra.mxu0 0.0
    %545 = vmatprep.subr.mxu0 0.0
    %546 = vmatpush2.msra.mxu0 0.0
    %547 = vmatprep.mubr.f32.mxu0 0.0
    %v548 = vand.u32 %v53, 4294901760
    %549 = vmatmul.mubr.f32.gmra.mxu0 %v548
    %v550 = vpop.f32.mrf.mxu0
    %v551 = vadd.f32 %v472, %v550
    %v552 = vpop.f32.mrf.mxu0
    %553 = vmatprep.mubr.f32.mxu0 0.0
    %v554 = vand.u32 %v56, 4294901760
    %555 = vmatmul.mubr.f32.gmra.mxu0 %v554
    %v556 = vpop.f32.mrf.mxu0
    %v557 = vadd.f32 %v478, %v556
    %v558 = vpop.f32.mrf.mxu0
    %559 = vdwg.mxu0
    %v560 = vmax.f32 %v551, 0.0
    %v561 = vmax.f32 %v557, 0.0
    %v562 = vld [vmem:[%s3] sm:$0xff]
    %v564 = vsel %vm51, %v562, 0
    %566 = vmatprep.subr.mxu0 0.0
    %567 = vmatpush1.msra.mxu0 0.0
    %568 = vmatprep.subr.mxu0 0.0
    %569 = vmatpush1.msra.mxu0 0.0
    %570 = vmatprep.subr.mxu0 0.0
    %571 = vmatpush1.msra.mxu0 0.0
    %572 = vmatprep.subr.mxu0 0.0
    %573 = vmatpush1.msra.mxu0 0.0
    %574 = vmatprep.subr.mxu0 0.0
    %575 = vmatpush1.msra.mxu0 0.0
    %576 = vmatprep.subr.mxu0 0.0
    %577 = vmatpush1.msra.mxu0 0.0
    %578 = vmatprep.subr.mxu0 0.0
    %579 = vmatpush1.msra.mxu0 0.0
    %580 = vmatprep.subr.mxu0 0.0
    %581 = vmatpush1.msra.mxu0 0.0
    %582 = vmatprep.subr.mxu0 0.0
    %583 = vmatpush1.msra.mxu0 0.0
    %584 = vmatprep.subr.mxu0 0.0
    %585 = vmatpush1.msra.mxu0 0.0
    %586 = vmatprep.subr.mxu0 0.0
    %587 = vmatpush1.msra.mxu0 0.0
    %588 = vmatprep.subr.mxu0 0.0
    %589 = vmatpush1.msra.mxu0 0.0
    %590 = vmatprep.subr.mxu0 0.0
    %591 = vmatpush1.msra.mxu0 0.0
    %592 = vmatprep.subr.mxu0 0.0
    %593 = vmatpush1.msra.mxu0 0.0
    %594 = vmatprep.subr.mxu0 0.0
    %v595 = vand.u32 %v561, 4294901760
    %596 = vmatpush1.msra.mxu0 %v595
    %597 = vmatprep.subr.mxu0 0.0
    %v598 = vand.u32 %v560, 4294901760
    %599 = vmatpush1.msra.mxu0 %v598
    %600 = vmatprep.subr.mxu0 0.0
    %601 = vmatpush2.msra.mxu0 0.0
    %602 = vmatprep.subr.mxu0 0.0
    %603 = vmatpush2.msra.mxu0 0.0
    %604 = vmatprep.subr.mxu0 0.0
    %605 = vmatpush2.msra.mxu0 0.0
    %606 = vmatprep.subr.mxu0 0.0
    %607 = vmatpush2.msra.mxu0 0.0
    %608 = vmatprep.subr.mxu0 0.0
    %609 = vmatpush2.msra.mxu0 0.0
    %610 = vmatprep.subr.mxu0 0.0
    %611 = vmatpush2.msra.mxu0 0.0
    %612 = vmatprep.subr.mxu0 0.0
    %613 = vmatpush2.msra.mxu0 0.0
    %614 = vmatprep.subr.mxu0 0.0
    %615 = vmatpush2.msra.mxu0 0.0
    %616 = vmatprep.subr.mxu0 0.0
    %617 = vmatpush2.msra.mxu0 0.0
    %618 = vmatprep.subr.mxu0 0.0
    %619 = vmatpush2.msra.mxu0 0.0
    %620 = vmatprep.subr.mxu0 0.0
    %621 = vmatpush2.msra.mxu0 0.0
    %622 = vmatprep.subr.mxu0 0.0
    %623 = vmatpush2.msra.mxu0 0.0
    %624 = vmatprep.subr.mxu0 0.0
    %625 = vmatpush2.msra.mxu0 0.0
    %626 = vmatprep.subr.mxu0 0.0
    %627 = vmatpush2.msra.mxu0 0.0
    %628 = vmatprep.subr.mxu0 0.0
    %629 = vmatpush2.msra.mxu0 0.0
    %630 = vmatprep.subr.mxu0 0.0
    %631 = vmatpush2.msra.mxu0 0.0
    %632 = vmatprep.mubr.f32.mxu0 0.0
    %v633 = vand.u32 %v564, 4294901760
    %v634 = vsub.f32 %v564, %v633
    %v635 = vand.u32 %v634, 4294901760
    %v636 = vsub.f32 %v634, %v635
    %v637 = vand.u32 %v636, 4294901760
    %638 = vmatmul.mubr.f32.gmra.mxu0 %v637
    %v639 = vpop.f32.mrf.mxu0
    %v640 = vadd.f32 0.0, %v639
    %v641 = vpop.f32.mrf.mxu0
    %642 = vdwg.mxu0
    %643 = vmatprep.subr.mxu0 0.0
    %644 = vmatpush1.msra.mxu0 0.0
    %645 = vmatprep.subr.mxu0 0.0
    %646 = vmatpush1.msra.mxu0 0.0
    %647 = vmatprep.subr.mxu0 0.0
    %648 = vmatpush1.msra.mxu0 0.0
    %649 = vmatprep.subr.mxu0 0.0
    %650 = vmatpush1.msra.mxu0 0.0
    %651 = vmatprep.subr.mxu0 0.0
    %652 = vmatpush1.msra.mxu0 0.0
    %653 = vmatprep.subr.mxu0 0.0
    %654 = vmatpush1.msra.mxu0 0.0
    %655 = vmatprep.subr.mxu0 0.0
    %656 = vmatpush1.msra.mxu0 0.0
    %657 = vmatprep.subr.mxu0 0.0
    %658 = vmatpush1.msra.mxu0 0.0
    %659 = vmatprep.subr.mxu0 0.0
    %660 = vmatpush1.msra.mxu0 0.0
    %661 = vmatprep.subr.mxu0 0.0
    %662 = vmatpush1.msra.mxu0 0.0
    %663 = vmatprep.subr.mxu0 0.0
    %664 = vmatpush1.msra.mxu0 0.0
    %665 = vmatprep.subr.mxu0 0.0
    %666 = vmatpush1.msra.mxu0 0.0
    %667 = vmatprep.subr.mxu0 0.0
    %668 = vmatpush1.msra.mxu0 0.0
    %669 = vmatprep.subr.mxu0 0.0
    %670 = vmatpush1.msra.mxu0 0.0
    %671 = vmatprep.subr.mxu0 0.0
    %v672 = vand.u32 %v561, 4294901760
    %v673 = vsub.f32 %v561, %v672
    %v674 = vand.u32 %v673, 4294901760
    %v675 = vsub.f32 %v673, %v674
    %v676 = vand.u32 %v675, 4294901760
    %677 = vmatpush1.msra.mxu0 %v676
    %678 = vmatprep.subr.mxu0 0.0
    %v679 = vand.u32 %v560, 4294901760
    %v680 = vsub.f32 %v560, %v679
    %v681 = vand.u32 %v680, 4294901760
    %v682 = vsub.f32 %v680, %v681
    %v683 = vand.u32 %v682, 4294901760
    %684 = vmatpush1.msra.mxu0 %v683
    %685 = vmatprep.subr.mxu0 0.0
    %686 = vmatpush2.msra.mxu0 0.0
    %687 = vmatprep.subr.mxu0 0.0
    %688 = vmatpush2.msra.mxu0 0.0
    %689 = vmatprep.subr.mxu0 0.0
    %690 = vmatpush2.msra.mxu0 0.0
    %691 = vmatprep.subr.mxu0 0.0
    %692 = vmatpush2.msra.mxu0 0.0
    %693 = vmatprep.subr.mxu0 0.0
    %694 = vmatpush2.msra.mxu0 0.0
    %695 = vmatprep.subr.mxu0 0.0
    %696 = vmatpush2.msra.mxu0 0.0
    %697 = vmatprep.subr.mxu0 0.0
    %698 = vmatpush2.msra.mxu0 0.0
    %699 = vmatprep.subr.mxu0 0.0
    %700 = vmatpush2.msra.mxu0 0.0
    %701 = vmatprep.subr.mxu0 0.0
    %702 = vmatpush2.msra.mxu0 0.0
    %703 = vmatprep.subr.mxu0 0.0
    %704 = vmatpush2.msra.mxu0 0.0
    %705 = vmatprep.subr.mxu0 0.0
    %706 = vmatpush2.msra.mxu0 0.0
    %707 = vmatprep.subr.mxu0 0.0
    %708 = vmatpush2.msra.mxu0 0.0
    %709 = vmatprep.subr.mxu0 0.0
    %710 = vmatpush2.msra.mxu0 0.0
    %711 = vmatprep.subr.mxu0 0.0
    %712 = vmatpush2.msra.mxu0 0.0
    %713 = vmatprep.subr.mxu0 0.0
    %714 = vmatpush2.msra.mxu0 0.0
    %715 = vmatprep.subr.mxu0 0.0
    %716 = vmatpush2.msra.mxu0 0.0
    %717 = vmatprep.mubr.f32.mxu0 0.0
    %v718 = vand.u32 %v564, 4294901760
    %719 = vmatmul.mubr.f32.gmra.mxu0 %v718
    %v720 = vpop.f32.mrf.mxu0
    %v721 = vadd.f32 %v640, %v720
    %v722 = vpop.f32.mrf.mxu0
    %723 = vdwg.mxu0
    %724 = vmatprep.subr.mxu0 0.0
    %725 = vmatpush1.msra.mxu0 0.0
    %726 = vmatprep.subr.mxu0 0.0
    %727 = vmatpush1.msra.mxu0 0.0
    %728 = vmatprep.subr.mxu0 0.0
    %729 = vmatpush1.msra.mxu0 0.0
    %730 = vmatprep.subr.mxu0 0.0
    %731 = vmatpush1.msra.mxu0 0.0
    %732 = vmatprep.subr.mxu0 0.0
    %733 = vmatpush1.msra.mxu0 0.0
    %734 = vmatprep.subr.mxu0 0.0
    %735 = vmatpush1.msra.mxu0 0.0
    %736 = vmatprep.subr.mxu0 0.0
    %737 = vmatpush1.msra.mxu0 0.0
    %738 = vmatprep.subr.mxu0 0.0
    %739 = vmatpush1.msra.mxu0 0.0
    %740 = vmatprep.subr.mxu0 0.0
    %741 = vmatpush1.msra.mxu0 0.0
    %742 = vmatprep.subr.mxu0 0.0
    %743 = vmatpush1.msra.mxu0 0.0
    %744 = vmatprep.subr.mxu0 0.0
    %745 = vmatpush1.msra.mxu0 0.0
    %746 = vmatprep.subr.mxu0 0.0
    %747 = vmatpush1.msra.mxu0 0.0
    %748 = vmatprep.subr.mxu0 0.0
    %749 = vmatpush1.msra.mxu0 0.0
    %750 = vmatprep.subr.mxu0 0.0
    %751 = vmatpush1.msra.mxu0 0.0
    %752 = vmatprep.subr.mxu0 0.0
    %v753 = vand.u32 %v561, 4294901760
    %v754 = vsub.f32 %v561, %v753
    %755 = vmatpush1.msra.mxu0 %v754
    %756 = vmatprep.subr.mxu0 0.0
    %v757 = vand.u32 %v560, 4294901760
    %v758 = vsub.f32 %v560, %v757
    %759 = vmatpush1.msra.mxu0 %v758
    %760 = vmatprep.subr.mxu0 0.0
    %761 = vmatpush2.msra.mxu0 0.0
    %762 = vmatprep.subr.mxu0 0.0
    %763 = vmatpush2.msra.mxu0 0.0
    %764 = vmatprep.subr.mxu0 0.0
    %765 = vmatpush2.msra.mxu0 0.0
    %766 = vmatprep.subr.mxu0 0.0
    %767 = vmatpush2.msra.mxu0 0.0
    %768 = vmatprep.subr.mxu0 0.0
    %769 = vmatpush2.msra.mxu0 0.0
    %770 = vmatprep.subr.mxu0 0.0
    %771 = vmatpush2.msra.mxu0 0.0
    %772 = vmatprep.subr.mxu0 0.0
    %773 = vmatpush2.msra.mxu0 0.0
    %774 = vmatprep.subr.mxu0 0.0
    %775 = vmatpush2.msra.mxu0 0.0
    %776 = vmatprep.subr.mxu0 0.0
    %777 = vmatpush2.msra.mxu0 0.0
    %778 = vmatprep.subr.mxu0 0.0
    %779 = vmatpush2.msra.mxu0 0.0
    %780 = vmatprep.subr.mxu0 0.0
    %781 = vmatpush2.msra.mxu0 0.0
    %782 = vmatprep.subr.mxu0 0.0
    %783 = vmatpush2.msra.mxu0 0.0
    %784 = vmatprep.subr.mxu0 0.0
    %785 = vmatpush2.msra.mxu0 0.0
    %786 = vmatprep.subr.mxu0 0.0
    %787 = vmatpush2.msra.mxu0 0.0
    %788 = vmatprep.subr.mxu0 0.0
    %789 = vmatpush2.msra.mxu0 0.0
    %790 = vmatprep.subr.mxu0 0.0
    %791 = vmatpush2.msra.mxu0 0.0
    %792 = vmatprep.mubr.f32.mxu0 0.0
    %v793 = vand.u32 %v564, 4294901760
    %v794 = vsub.f32 %v564, %v793
    %795 = vmatmul.mubr.f32.gmra.mxu0 %v794
    %v796 = vpop.f32.mrf.mxu0
    %v797 = vadd.f32 %v721, %v796
    %v798 = vpop.f32.mrf.mxu0
    %799 = vdwg.mxu0
    %800 = vmatprep.subr.mxu0 0.0
    %801 = vmatpush1.msra.mxu0 0.0
    %802 = vmatprep.subr.mxu0 0.0
    %803 = vmatpush1.msra.mxu0 0.0
    %804 = vmatprep.subr.mxu0 0.0
    %805 = vmatpush1.msra.mxu0 0.0
    %806 = vmatprep.subr.mxu0 0.0
    %807 = vmatpush1.msra.mxu0 0.0
    %808 = vmatprep.subr.mxu0 0.0
    %809 = vmatpush1.msra.mxu0 0.0
    %810 = vmatprep.subr.mxu0 0.0
    %811 = vmatpush1.msra.mxu0 0.0
    %812 = vmatprep.subr.mxu0 0.0
    %813 = vmatpush1.msra.mxu0 0.0
    %814 = vmatprep.subr.mxu0 0.0
    %815 = vmatpush1.msra.mxu0 0.0
    %816 = vmatprep.subr.mxu0 0.0
    %817 = vmatpush1.msra.mxu0 0.0
    %818 = vmatprep.subr.mxu0 0.0
    %819 = vmatpush1.msra.mxu0 0.0
    %820 = vmatprep.subr.mxu0 0.0
    %821 = vmatpush1.msra.mxu0 0.0
    %822 = vmatprep.subr.mxu0 0.0
    %823 = vmatpush1.msra.mxu0 0.0
    %824 = vmatprep.subr.mxu0 0.0
    %825 = vmatpush1.msra.mxu0 0.0
    %826 = vmatprep.subr.mxu0 0.0
    %827 = vmatpush1.msra.mxu0 0.0
    %828 = vmatprep.subr.mxu0 0.0
    %v829 = vand.u32 %v561, 4294901760
    %830 = vmatpush1.msra.mxu0 %v829
    %831 = vmatprep.subr.mxu0 0.0
    %v832 = vand.u32 %v560, 4294901760
    %833 = vmatpush1.msra.mxu0 %v832
    %834 = vmatprep.subr.mxu0 0.0
    %835 = vmatpush2.msra.mxu0 0.0
    %836 = vmatprep.subr.mxu0 0.0
    %837 = vmatpush2.msra.mxu0 0.0
    %838 = vmatprep.subr.mxu0 0.0
    %839 = vmatpush2.msra.mxu0 0.0
    %840 = vmatprep.subr.mxu0 0.0
    %841 = vmatpush2.msra.mxu0 0.0
    %842 = vmatprep.subr.mxu0 0.0
    %843 = vmatpush2.msra.mxu0 0.0
    %844 = vmatprep.subr.mxu0 0.0
    %845 = vmatpush2.msra.mxu0 0.0
    %846 = vmatprep.subr.mxu0 0.0
    %847 = vmatpush2.msra.mxu0 0.0
    %848 = vmatprep.subr.mxu0 0.0
    %849 = vmatpush2.msra.mxu0 0.0
    %850 = vmatprep.subr.mxu0 0.0
    %851 = vmatpush2.msra.mxu0 0.0
    %852 = vmatprep.subr.mxu0 0.0
    %853 = vmatpush2.msra.mxu0 0.0
    %854 = vmatprep.subr.mxu0 0.0
    %855 = vmatpush2.msra.mxu0 0.0
    %856 = vmatprep.subr.mxu0 0.0
    %857 = vmatpush2.msra.mxu0 0.0
    %858 = vmatprep.subr.mxu0 0.0
    %859 = vmatpush2.msra.mxu0 0.0
    %860 = vmatprep.subr.mxu0 0.0
    %861 = vmatpush2.msra.mxu0 0.0
    %862 = vmatprep.subr.mxu0 0.0
    %863 = vmatpush2.msra.mxu0 0.0
    %864 = vmatprep.subr.mxu0 0.0
    %865 = vmatpush2.msra.mxu0 0.0
    %866 = vmatprep.mubr.f32.mxu0 0.0
    %v867 = vand.u32 %v564, 4294901760
    %v868 = vsub.f32 %v564, %v867
    %v869 = vand.u32 %v868, 4294901760
    %870 = vmatmul.mubr.f32.gmra.mxu0 %v869
    %v871 = vpop.f32.mrf.mxu0
    %v872 = vadd.f32 %v797, %v871
    %v873 = vpop.f32.mrf.mxu0
    %874 = vdwg.mxu0
    %875 = vmatprep.subr.mxu0 0.0
    %876 = vmatpush1.msra.mxu0 0.0
    %877 = vmatprep.subr.mxu0 0.0
    %878 = vmatpush1.msra.mxu0 0.0
    %879 = vmatprep.subr.mxu0 0.0
    %880 = vmatpush1.msra.mxu0 0.0
    %881 = vmatprep.subr.mxu0 0.0
    %882 = vmatpush1.msra.mxu0 0.0
    %883 = vmatprep.subr.mxu0 0.0
    %884 = vmatpush1.msra.mxu0 0.0
    %885 = vmatprep.subr.mxu0 0.0
    %886 = vmatpush1.msra.mxu0 0.0
    %887 = vmatprep.subr.mxu0 0.0
    %888 = vmatpush1.msra.mxu0 0.0
    %889 = vmatprep.subr.mxu0 0.0
    %890 = vmatpush1.msra.mxu0 0.0
    %891 = vmatprep.subr.mxu0 0.0
    %892 = vmatpush1.msra.mxu0 0.0
    %893 = vmatprep.subr.mxu0 0.0
    %894 = vmatpush1.msra.mxu0 0.0
    %895 = vmatprep.subr.mxu0 0.0
    %896 = vmatpush1.msra.mxu0 0.0
    %897 = vmatprep.subr.mxu0 0.0
    %898 = vmatpush1.msra.mxu0 0.0
    %899 = vmatprep.subr.mxu0 0.0
    %900 = vmatpush1.msra.mxu0 0.0
    %901 = vmatprep.subr.mxu0 0.0
    %902 = vmatpush1.msra.mxu0 0.0
    %903 = vmatprep.subr.mxu0 0.0
    %v904 = vand.u32 %v561, 4294901760
    %v905 = vsub.f32 %v561, %v904
    %v906 = vand.u32 %v905, 4294901760
    %907 = vmatpush1.msra.mxu0 %v906
    %908 = vmatprep.subr.mxu0 0.0
    %v909 = vand.u32 %v560, 4294901760
    %v910 = vsub.f32 %v560, %v909
    %v911 = vand.u32 %v910, 4294901760
    %912 = vmatpush1.msra.mxu0 %v911
    %913 = vmatprep.subr.mxu0 0.0
    %914 = vmatpush2.msra.mxu0 0.0
    %915 = vmatprep.subr.mxu0 0.0
    %916 = vmatpush2.msra.mxu0 0.0
    %917 = vmatprep.subr.mxu0 0.0
    %918 = vmatpush2.msra.mxu0 0.0
    %919 = vmatprep.subr.mxu0 0.0
    %920 = vmatpush2.msra.mxu0 0.0
    %921 = vmatprep.subr.mxu0 0.0
    %922 = vmatpush2.msra.mxu0 0.0
    %923 = vmatprep.subr.mxu0 0.0
    %924 = vmatpush2.msra.mxu0 0.0
    %925 = vmatprep.subr.mxu0 0.0
    %926 = vmatpush2.msra.mxu0 0.0
    %927 = vmatprep.subr.mxu0 0.0
    %928 = vmatpush2.msra.mxu0 0.0
    %929 = vmatprep.subr.mxu0 0.0
    %930 = vmatpush2.msra.mxu0 0.0
    %931 = vmatprep.subr.mxu0 0.0
    %932 = vmatpush2.msra.mxu0 0.0
    %933 = vmatprep.subr.mxu0 0.0
    %934 = vmatpush2.msra.mxu0 0.0
    %935 = vmatprep.subr.mxu0 0.0
    %936 = vmatpush2.msra.mxu0 0.0
    %937 = vmatprep.subr.mxu0 0.0
    %938 = vmatpush2.msra.mxu0 0.0
    %939 = vmatprep.subr.mxu0 0.0
    %940 = vmatpush2.msra.mxu0 0.0
    %941 = vmatprep.subr.mxu0 0.0
    %942 = vmatpush2.msra.mxu0 0.0
    %943 = vmatprep.subr.mxu0 0.0
    %944 = vmatpush2.msra.mxu0 0.0
    %945 = vmatprep.mubr.f32.mxu0 0.0
    %v946 = vand.u32 %v564, 4294901760
    %947 = vmatmul.mubr.f32.gmra.mxu0 %v946
    %v948 = vpop.f32.mrf.mxu0
    %v949 = vadd.f32 %v872, %v948
    %v950 = vpop.f32.mrf.mxu0
    %951 = vdwg.mxu0
    %952 = vmatprep.subr.mxu0 0.0
    %953 = vmatpush1.msra.mxu0 0.0
    %954 = vmatprep.subr.mxu0 0.0
    %955 = vmatpush1.msra.mxu0 0.0
    %956 = vmatprep.subr.mxu0 0.0
    %957 = vmatpush1.msra.mxu0 0.0
    %958 = vmatprep.subr.mxu0 0.0
    %959 = vmatpush1.msra.mxu0 0.0
    %960 = vmatprep.subr.mxu0 0.0
    %961 = vmatpush1.msra.mxu0 0.0
    %962 = vmatprep.subr.mxu0 0.0
    %963 = vmatpush1.msra.mxu0 0.0
    %964 = vmatprep.subr.mxu0 0.0
    %965 = vmatpush1.msra.mxu0 0.0
    %966 = vmatprep.subr.mxu0 0.0
    %967 = vmatpush1.msra.mxu0 0.0
    %968 = vmatprep.subr.mxu0 0.0
    %969 = vmatpush1.msra.mxu0 0.0
    %970 = vmatprep.subr.mxu0 0.0
    %971 = vmatpush1.msra.mxu0 0.0
    %972 = vmatprep.subr.mxu0 0.0
    %973 = vmatpush1.msra.mxu0 0.0
    %974 = vmatprep.subr.mxu0 0.0
    %975 = vmatpush1.msra.mxu0 0.0
    %976 = vmatprep.subr.mxu0 0.0
    %977 = vmatpush1.msra.mxu0 0.0
    %978 = vmatprep.subr.mxu0 0.0
    %979 = vmatpush1.msra.mxu0 0.0
    %980 = vmatprep.subr.mxu0 0.0
    %v981 = vand.u32 %v561, 4294901760
    %982 = vmatpush1.msra.mxu0 %v981
    %983 = vmatprep.subr.mxu0 0.0
    %v984 = vand.u32 %v560, 4294901760
    %985 = vmatpush1.msra.mxu0 %v984
    %986 = vmatprep.subr.mxu0 0.0
    %987 = vmatpush2.msra.mxu0 0.0
    %988 = vmatprep.subr.mxu0 0.0
    %989 = vmatpush2.msra.mxu0 0.0
    %990 = vmatprep.subr.mxu0 0.0
    %991 = vmatpush2.msra.mxu0 0.0
    %992 = vmatprep.subr.mxu0 0.0
    %993 = vmatpush2.msra.mxu0 0.0
    %994 = vmatprep.subr.mxu0 0.0
    %995 = vmatpush2.msra.mxu0 0.0
    %996 = vmatprep.subr.mxu0 0.0
    %997 = vmatpush2.msra.mxu0 0.0
    %998 = vmatprep.subr.mxu0 0.0
    %999 = vmatpush2.msra.mxu0 0.0
    %1000 = vmatprep.subr.mxu0 0.0
    %1001 = vmatpush2.msra.mxu0 0.0
    %1002 = vmatprep.subr.mxu0 0.0
    %1003 = vmatpush2.msra.mxu0 0.0
    %1004 = vmatprep.subr.mxu0 0.0
    %1005 = vmatpush2.msra.mxu0 0.0
    %1006 = vmatprep.subr.mxu0 0.0
    %1007 = vmatpush2.msra.mxu0 0.0
    %1008 = vmatprep.subr.mxu0 0.0
    %1009 = vmatpush2.msra.mxu0 0.0
    %1010 = vmatprep.subr.mxu0 0.0
    %1011 = vmatpush2.msra.mxu0 0.0
    %1012 = vmatprep.subr.mxu0 0.0
    %1013 = vmatpush2.msra.mxu0 0.0
    %1014 = vmatprep.subr.mxu0 0.0
    %1015 = vmatpush2.msra.mxu0 0.0
    %1016 = vmatprep.subr.mxu0 0.0
    %1017 = vmatpush2.msra.mxu0 0.0
    %1018 = vmatprep.mubr.f32.mxu0 0.0
    %v1019 = vand.u32 %v564, 4294901760
    %1020 = vmatmul.mubr.f32.gmra.mxu0 %v1019
    %v1021 = vpop.f32.mrf.mxu0
    %v1022 = vadd.f32 %v949, %v1021
    %v1023 = vpop.f32.mrf.mxu0
    %1024 = vdwg.mxu0
    %v1025 = vld [vmem:[%s4] sm:$0x3]
    %1027 = vset.pattern.permute.xlu0 0
    %1028 = vperm.xlu0 %1027, %v1025
    %v1029 = vpop.permute.xlu0 %1028
    %v1031 = vadd.f32 %v1022, %v1029
    %v1032 = vand.u32 2147483647, %v1031
    %v1033 = vsub.f32 0.0, %v1032
    %v1034 = vmul.f32 %v1033, 1.442695
    %v1035 = vpow.pop %v1034
    %v1036 = vadd.f32 %v1035, 1.0
    %v1037 = vrcp.pop %v1036
    %vm1038 = vcmp.ge.f32.partialorder %v1031, 0.0
    %v1039 = vsub.f32 1.0, %v1037
    %v1040 = vsel %vm1038, %v1037, %v1039
    %1041 = vst [vmem:[#allocation5] sm:$0x3] %v1040
    // Predicated region
    $region26: #{tpu_custom_call.1} parent=1 // pred_check
      _
    $region27: #{tpu_custom_call.1} parent=1 // pred_check_branch
      %1043 = sbr.rel (0) target = $region29
    $region28: #{tpu_custom_call.1} parent=1 // pred_region
      %s1045 = ssub.s32 32, 32
      %1046 = vsyncadd [#allocation4], %s1045
      %s1048 = sshll.u32 [#allocation5], 4
      %s1049 = int_to_ptr.vmem [resolvable:$true] %s1048
      %1051 = dma.vmem_to_hbm [thread:$0]  %s1049, 32, %s5, [#allocation4]
    $region29: #{tpu_custom_call.1} parent=1 // pred_fallthru
      _
    // Predicated region
    $region30: #{tpu_custom_call.1} parent=1 // pred_check
      _
    $region31: #{tpu_custom_call.1} parent=1 // pred_check_branch
      %1053 = sbr.rel (0) target = $region33
    $region32: #{tpu_custom_call.1} parent=1 // pred_region
      %1054 = dma.done [#allocation4], 32
    $region33: #{tpu_custom_call.1} parent=1 // pred_fallthru
      _
    %1055 = vsyncpa [#allocation3], 1
    %1056 = vsyncpa [#allocation4], 1

</llo_original>
